<compile_context>
chip_gen: v7x
topology: tpu7x:2x2x1
jax: 0.10.0
libtpu: 0.0.40
codegen_flags: <defaults>
</compile_context>

<pallas_src>
import functools

import jax
import jax.numpy as jnp
from jax.experimental import pallas as pl
from jax.experimental.pallas import tpu as pltpu

N_STATES = 4     # e.g. CartPole observation dim
N_ACTIONS = 2    # e.g. CartPole action dim
HIDDEN = 10

H_PAD = 16       # hidden padded to a sublane-friendly size (zeros are inert)


def _round_up(n, m):
    return ((n + m - 1) // m) * m


def net_kernel(x_ref, w1t_ref, b1_ref, w2t_ref, b2_ref, out_ref):
    """Fused fc1 -> ReLU -> out for one batch block (batch-major).

      x    : (bb, N_STATES)
      w1t  : (N_STATES, H_PAD)   = w1.T zero-padded on the hidden axis
      b1   : (1, H_PAD)
      w2t  : (H_PAD, N_ACTIONS)  = w2.T zero-padded on the hidden axis
      b2   : (1, N_ACTIONS)
      out  : (bb, N_ACTIONS)
    """
    x = x_ref[...]
    h = jnp.dot(x, w1t_ref[...], preferred_element_type=jnp.float32)   # (bb, H_PAD)
    h = jnp.maximum(h + b1_ref[...], 0.0)                              # bias + ReLU
    y = jnp.dot(h, w2t_ref[...], preferred_element_type=jnp.float32)   # (bb, A)
    out_ref[...] = (y + b2_ref[...]).astype(out_ref.dtype)


@functools.partial(jax.jit, static_argnames=("block_b",))
def net_forward(x, w1t_p, b1_p, w2t_p, b2_p, *, block_b=4096):
    """Forward pass. x: (B, N_STATES) f32 -> (B, N_ACTIONS) f32.

    w1t_p/b1_p/w2t_p/b2_p are the padded kernel-layout params from pad_params().
    """
    B = x.shape[0]
    x = x.astype(jnp.float32)

    # Block of batch rows per grid step:
    #  * at least 2 blocks whenever B allows it (v7x: keep both TCs busy),
    #  * capped at block_b rows (VMEM / per-step amortization trade-off),
    #  * sublane-aligned (multiple of 8).
    # The last block may be partial; Pallas masks OOB reads/writes.
    half = _round_up(pl.cdiv(B, 2), 8)
    bb = max(8, min(_round_up(block_b, 8), half))
    grid = (pl.cdiv(B, bb),)

    return pl.pallas_call(
        net_kernel,
        out_shape=jax.ShapeDtypeStruct((B, N_ACTIONS), jnp.float32),
        grid_spec=pltpu.PrefetchScalarGridSpec(
            num_scalar_prefetch=0,
            grid=grid,
            in_specs=[
                pl.BlockSpec((bb, N_STATES), lambda i: (i, 0)),        # x block
                pl.BlockSpec((N_STATES, H_PAD), lambda i: (0, 0)),     # w1t (resident)
                pl.BlockSpec((1, H_PAD), lambda i: (0, 0)),            # b1
                pl.BlockSpec((H_PAD, N_ACTIONS), lambda i: (0, 0)),    # w2t
                pl.BlockSpec((1, N_ACTIONS), lambda i: (0, 0)),        # b2
            ],
            out_specs=pl.BlockSpec((bb, N_ACTIONS), lambda i: (i, 0)),
        ),
        compiler_params=pltpu.CompilerParams(
            # Batch blocks are independent -> shard across TensorCores (v7x).
            dimension_semantics=("parallel",),
            # Safe on v5e (16 MiB default scoped), v6e, and v7x (64 MiB phys).
            vmem_limit_bytes=32 * 1024 * 1024,
        ),
    )(x, w1t_p, b1_p, w2t_p, b2_p)


def init_params(key):
    """Matches the PyTorch module: weights ~ N(0, 0.1), torch (out, in) layout,
    biases ~ U(-1/sqrt(fan_in), 1/sqrt(fan_in)) (torch Linear default)."""
    k1, k2, k3, k4 = jax.random.split(key, 4)
    w1 = 0.1 * jax.random.normal(k1, (HIDDEN, N_STATES), dtype=jnp.float32)
    w2 = 0.1 * jax.random.normal(k2, (N_ACTIONS, HIDDEN), dtype=jnp.float32)
    bound1 = 1.0 / jnp.sqrt(jnp.float32(N_STATES))
    bound2 = 1.0 / jnp.sqrt(jnp.float32(HIDDEN))
    b1 = jax.random.uniform(k3, (HIDDEN,), jnp.float32, -bound1, bound1)
    b2 = jax.random.uniform(k4, (N_ACTIONS,), jnp.float32, -bound2, bound2)
    return w1, b1, w2, b2


def pad_params(w1, b1, w2, b2):
    """One-time conversion to kernel layout (transposed, hidden zero-padded).

    Padded hidden lanes see weight 0 and bias 0, so relu(0)=0 feeds zero rows
    of w2t -- valid outputs are bit-identical to the unpadded math."""
    w1t_p = jnp.zeros((N_STATES, H_PAD), jnp.float32).at[:, :HIDDEN].set(w1.T)
    b1_p = jnp.zeros((1, H_PAD), jnp.float32).at[0, :HIDDEN].set(b1)
    w2t_p = jnp.zeros((H_PAD, N_ACTIONS), jnp.float32).at[:HIDDEN, :].set(w2.T)
    b2_p = b2.reshape(1, N_ACTIONS).astype(jnp.float32)
    return w1t_p, b1_p, w2t_p, b2_p


if __name__ == "__main__":
    key = jax.random.PRNGKey(0)
    k_x1, k_x2, k_p = jax.random.split(key, 3)

    w1, b1, w2, b2 = init_params(k_p)
    params = pad_params(w1, b1, w2, b2)

    def ref(xx):
        return jnp.maximum(xx @ w1.T + b1, 0.0) @ w2.T + b2

    # Small eval-style batch (single grid step).
    B = 8
    x = jax.random.normal(k_x1, (B, N_STATES), dtype=jnp.float32)
    y = jax.block_until_ready(net_forward(x, *params))
    assert y.shape == (B, N_ACTIONS)
    assert jnp.allclose(y, ref(x), atol=1e-5, rtol=1e-5)

    # Training-style batch exercising 2 parallel blocks + a partial last block.
    B2 = 300
    x2 = jax.random.normal(k_x2, (B2, N_STATES), dtype=jnp.float32)
    y2 = jax.block_until_ready(net_forward(x2, *params))
    assert y2.shape == (B2, N_ACTIONS)
    assert jnp.allclose(y2, ref(x2), atol=1e-5, rtol=1e-5)

    print("KERNEL_OK")
</pallas_src>

<mosaic_0001>
module attributes {stable_mosaic.version = 11 : i64} {
  func.func @net_kernel(%arg0: i32, %arg1: memref<8x4xf32, #tpu.memory_space<vmem>>, %arg2: memref<4x16xf32, #tpu.memory_space<vmem>>, %arg3: memref<1x16xf32, #tpu.memory_space<vmem>>, %arg4: memref<16x2xf32, #tpu.memory_space<vmem>>, %arg5: memref<1x2xf32, #tpu.memory_space<vmem>>, %arg6: memref<8x2xf32, #tpu.memory_space<vmem>>) attributes {dimension_semantics = [#tpu.dimension_semantics<parallel>], iteration_bounds = array<i64: 1>, scalar_prefetch = 0 : i64, scratch_operands = 0 : i64, tpu.core_type = #tpu.core_type<tc>, window_params = [{transform_indices = @transform_0, window_bounds = array<i64: 8, 4>}, {pipeline_mode = #tpu.pipeline_mode<synchronous>, transform_indices = @transform_1, window_bounds = array<i64: 4, 16>}, {pipeline_mode = #tpu.pipeline_mode<synchronous>, transform_indices = @transform_2, window_bounds = array<i64: 1, 16>}, {pipeline_mode = #tpu.pipeline_mode<synchronous>, transform_indices = @transform_3, window_bounds = array<i64: 16, 2>}, {pipeline_mode = #tpu.pipeline_mode<synchronous>, transform_indices = @transform_4, window_bounds = array<i64: 1, 2>}, {transform_indices = @transform_5, window_bounds = array<i64: 8, 2>}]} {
    %c0 = arith.constant 0 : index
    %c0_0 = arith.constant 0 : index
    %0 = vector.load %arg1[%c0, %c0_0] : memref<8x4xf32, #tpu.memory_space<vmem>>, vector<8x4xf32>
    %c0_1 = arith.constant 0 : index
    %c0_2 = arith.constant 0 : index
    %1 = vector.load %arg2[%c0_1, %c0_2] : memref<4x16xf32, #tpu.memory_space<vmem>>, vector<4x16xf32>
    %cst = arith.constant dense<0.000000e+00> : vector<8x16xf32>
    %2 = tpu.matmul %0, %1, %cst {dimension_numbers = #tpu.dot_dimension_numbers<[1], [0], [0], [1], [0, 0, 1, 1], [], []>} : vector<8x4xf32>, vector<4x16xf32>, vector<8x16xf32> -> vector<8x16xf32>
    %c0_3 = arith.constant 0 : index
    %c0_4 = arith.constant 0 : index
    %3 = vector.load %arg3[%c0_3, %c0_4] : memref<1x16xf32, #tpu.memory_space<vmem>>, vector<1x16xf32>
    %4 = vector.broadcast %3 : vector<1x16xf32> to vector<8x16xf32>
    %5 = arith.addf %2, %4 : vector<8x16xf32>
    %cst_5 = arith.constant 0.000000e+00 : f32
    %6 = vector.broadcast %cst_5 : f32 to vector<8x16xf32>
    %7 = arith.maximumf %5, %6 : vector<8x16xf32>
    %c0_6 = arith.constant 0 : index
    %c0_7 = arith.constant 0 : index
    %8 = vector.load %arg4[%c0_6, %c0_7] : memref<16x2xf32, #tpu.memory_space<vmem>>, vector<16x2xf32>
    %cst_8 = arith.constant dense<0.000000e+00> : vector<8x2xf32>
    %9 = tpu.matmul %7, %8, %cst_8 {dimension_numbers = #tpu.dot_dimension_numbers<[1], [0], [0], [1], [0, 0, 1, 1], [], []>} : vector<8x16xf32>, vector<16x2xf32>, vector<8x2xf32> -> vector<8x2xf32>
    %c0_9 = arith.constant 0 : index
    %c0_10 = arith.constant 0 : index
    %10 = vector.load %arg5[%c0_9, %c0_10] : memref<1x2xf32, #tpu.memory_space<vmem>>, vector<1x2xf32>
    %11 = vector.broadcast %10 : vector<1x2xf32> to vector<8x2xf32>
    %12 = arith.addf %9, %11 : vector<8x2xf32>
    %c0_11 = arith.constant 0 : index
    %c0_12 = arith.constant 0 : index
    %13 = vector.load %arg6[%c0_11, %c0_12] : memref<8x2xf32, #tpu.memory_space<vmem>>, vector<8x2xf32>
    tpu.vector_store %arg6[%c0_11, %c0_12], %12 {strides = array<i32>} : memref<8x2xf32, #tpu.memory_space<vmem>>, vector<8x2xf32>,
    return
  }
  func.func @transform_0(%arg0: i32) -> (i32, i32) {
    %c0_i32 = arith.constant 0 : i32
    %c0_i32_0 = arith.constant 0 : i32
    return %arg0, %c0_i32 : i32, i32
  }
  func.func @transform_1(%arg0: i32) -> (i32, i32) {
    %c0_i32 = arith.constant 0 : i32
    %c0_i32_0 = arith.constant 0 : i32
    %c0_i32_1 = arith.constant 0 : i32
    return %c0_i32, %c0_i32_0 : i32, i32
  }
  func.func @transform_2(%arg0: i32) -> (i32, i32) {
    %c0_i32 = arith.constant 0 : i32
    %c0_i32_0 = arith.constant 0 : i32
    %c0_i32_1 = arith.constant 0 : i32
    return %c0_i32, %c0_i32_0 : i32, i32
  }
  func.func @transform_3(%arg0: i32) -> (i32, i32) {
    %c0_i32 = arith.constant 0 : i32
    %c0_i32_0 = arith.constant 0 : i32
    %c0_i32_1 = arith.constant 0 : i32
    return %c0_i32, %c0_i32_0 : i32, i32
  }
  func.func @transform_4(%arg0: i32) -> (i32, i32) {
    %c0_i32 = arith.constant 0 : i32
    %c0_i32_0 = arith.constant 0 : i32
    %c0_i32_1 = arith.constant 0 : i32
    return %c0_i32, %c0_i32_0 : i32, i32
  }
  func.func @transform_5(%arg0: i32) -> (i32, i32) {
    %c0_i32 = arith.constant 0 : i32
    %c0_i32_0 = arith.constant 0 : i32
    return %arg0, %c0_i32 : i32, i32
  }
}

</mosaic_0001>

<llo_original>
// kernel: net_forward.1
$region0: #{net_forward.1}
  #allocation0 [shape = 'u32[]', space=smem, size = 0x4, offset = 0x4, fixed_abs, tag = 'smem constant byte address 0x4 - core index']
  #allocation1 [shape = 'u32[144,128]{1,0:T(1,128)}', space=vmem, size = 0x12000, scoped, tag = 'internal scratch']
  %s0 = inlined_call_operand.vmem [shape: f32[8,4], index: 0, kind: input, shape index: {}]
  %s1 = inlined_call_operand.vmem [shape: f32[4,16], index: 1, kind: input, shape index: {}]
  %s2 = inlined_call_operand.vmem [shape: f32[1,16], index: 2, kind: input, shape index: {}]
  %s3 = inlined_call_operand.vmem [shape: f32[16,2], index: 3, kind: input, shape index: {}]
  %s4 = inlined_call_operand.vmem [shape: f32[1,2], index: 4, kind: input, shape index: {}]
  %s5 = inlined_call_operand.vmem [shape: f32[8,2], index: 5, kind: output, shape index: {}]
  %s6 = sld [smem:[#allocation0]]
  $region30: #{net_forward.1} parent=0
    _
  %s8 = ssub.s32 1, %s6
  %s9 = scalar_select 0, %s8, %s6
  // Predicated region
  $region2: #{net_forward.1} parent=0 // pred_check
    _
  $region3: #{net_forward.1} parent=0 // pred_check_branch
    %11 = sbr.rel (0) target = $region5
  $region4: #{net_forward.1} parent=0 // pred_region
    _
  $region5: #{net_forward.1} parent=0 // pred_fallthru
    _
  // Predicated region
  $region6: #{net_forward.1} parent=0 // pred_check
    _
  $region7: #{net_forward.1} parent=0 // pred_check_branch
    %13 = sbr.rel (0) target = $region9
  $region8: #{net_forward.1} parent=0 // pred_region
    _
  $region9: #{net_forward.1} parent=0 // pred_fallthru
    _
  // Predicated region
  $region10: #{net_forward.1} parent=0 // pred_check
    _
  $region11: #{net_forward.1} parent=0 // pred_check_branch
    %15 = sbr.rel (0) target = $region13
  $region12: #{net_forward.1} parent=0 // pred_region
    _
  $region13: #{net_forward.1} parent=0 // pred_fallthru
    _
  // Predicated region
  $region14: #{net_forward.1} parent=0 // pred_check
    _
  $region15: #{net_forward.1} parent=0 // pred_check_branch
    %17 = sbr.rel (0) target = $region17
  $region16: #{net_forward.1} parent=0 // pred_region
    _
  $region17: #{net_forward.1} parent=0 // pred_fallthru
    _
  // Predicated region
  $region18: #{net_forward.1} parent=0 // pred_check
    _
  $region19: #{net_forward.1} parent=0 // pred_check_branch
    %19 = sbr.rel (0) target = $region21
  $region20: #{net_forward.1} parent=0 // pred_region
    _
  $region21: #{net_forward.1} parent=0 // pred_fallthru
    _
  %v20 = vld [vmem:[%s0] sm:$0xff]
  %v21 = vld [vmem:[%s1] sm:$0xf]
  %v22 = vld [vmem:[%s2] sm:$0x1]
  %v24 = vlaneseq
  %v25 = vshrl.u32 %v24, 7
  %v26 = vsub.s32 0, %v25
  %v27 = vrot.slane %v22, %v26
  %vm29 = vcmask 31744
  %v31 = vsel %vm29, %v20, 0
  %vm33 = vcmask 1043456
  %v35 = vsel %vm33, %v21, 0
  %37 = vmatprep.subr.mxu0 0.0
  %38 = vmatpush1.msra.mxu0 %v35
  %39 = vmatprep.subr.mxu0 0.0
  %40 = vmatpush1.msra.mxu0 0.0
  %41 = vmatprep.subr.mxu0 0.0
  %42 = vmatpush1.msra.mxu0 0.0
  %43 = vmatprep.subr.mxu0 0.0
  %44 = vmatpush1.msra.mxu0 0.0
  %45 = vmatprep.subr.mxu0 0.0
  %46 = vmatpush1.msra.mxu0 0.0
  %47 = vmatprep.subr.mxu0 0.0
  %48 = vmatpush1.msra.mxu0 0.0
  %49 = vmatprep.subr.mxu0 0.0
  %50 = vmatpush1.msra.mxu0 0.0
  %51 = vmatprep.subr.mxu0 0.0
  %52 = vmatpush1.msra.mxu0 0.0
  %53 = vmatprep.subr.mxu0 0.0
  %54 = vmatpush1.msra.mxu0 0.0
  %55 = vmatprep.subr.mxu0 0.0
  %56 = vmatpush1.msra.mxu0 0.0
  %57 = vmatprep.subr.mxu0 0.0
  %58 = vmatpush1.msra.mxu0 0.0
  %59 = vmatprep.subr.mxu0 0.0
  %60 = vmatpush1.msra.mxu0 0.0
  %61 = vmatprep.subr.mxu0 0.0
  %62 = vmatpush1.msra.mxu0 0.0
  %63 = vmatprep.subr.mxu0 0.0
  %64 = vmatpush1.msra.mxu0 0.0
  %65 = vmatprep.subr.mxu0 0.0
  %66 = vmatpush1.msra.mxu0 0.0
  %67 = vmatprep.subr.mxu0 0.0
  %68 = vmatpush1.msra.mxu0 0.0
  %69 = vmatprep.subr.mxu0 0.0
  %70 = vmatpush1.msra.mxu0 0.0
  %71 = vmatprep.subr.mxu0 0.0
  %72 = vmatpush1.msra.mxu0 0.0
  %73 = vmatprep.subr.mxu0 0.0
  %74 = vmatpush1.msra.mxu0 0.0
  %75 = vmatprep.subr.mxu0 0.0
  %76 = vmatpush1.msra.mxu0 0.0
  %77 = vmatprep.subr.mxu0 0.0
  %78 = vmatpush1.msra.mxu0 0.0
  %79 = vmatprep.subr.mxu0 0.0
  %80 = vmatpush1.msra.mxu0 0.0
  %81 = vmatprep.subr.mxu0 0.0
  %82 = vmatpush1.msra.mxu0 0.0
  %83 = vmatprep.subr.mxu0 0.0
  %84 = vmatpush1.msra.mxu0 0.0
  %85 = vmatprep.subr.mxu0 0.0
  %86 = vmatpush1.msra.mxu0 0.0
  %87 = vmatprep.subr.mxu0 0.0
  %88 = vmatpush1.msra.mxu0 0.0
  %89 = vmatprep.subr.mxu0 0.0
  %90 = vmatpush1.msra.mxu0 0.0
  %91 = vmatprep.subr.mxu0 0.0
  %92 = vmatpush1.msra.mxu0 0.0
  %93 = vmatprep.subr.mxu0 0.0
  %94 = vmatpush1.msra.mxu0 0.0
  %95 = vmatprep.subr.mxu0 0.0
  %96 = vmatpush1.msra.mxu0 0.0
  %97 = vmatprep.subr.mxu0 0.0
  %98 = vmatpush1.msra.mxu0 0.0
  %99 = vmatprep.subr.mxu0 0.0
  %100 = vmatpush1.msra.mxu0 0.0
  %101 = vmatprep.mubr.f32.mxu0 0.0
  %102 = vmatmul.mubr.f32.gmra.mrb[0].mxu0 %v31
  %v103 = vpop.f32.mrb[0].mxu0
  %v104 = vadd.f32 %v27, %v103
  %v105 = vpop.f32.mrb[0].mxu0
  %106 = vdwg.mxu0
  %v107 = vmax.f32 %v104, 0.0
  %v108 = vld [vmem:[%s3] sm:$0xff]
  %v109 = vld [vmem:[%s3 + $0x8] sm:$0xff]
  %v110 = vld [vmem:[%s4] sm:$0x1]
  %v112 = vlaneseq
  %v113 = vshrl.u32 %v112, 7
  %v114 = vsub.s32 0, %v113
  %v115 = vrot.slane %v110, %v114
  %vm117 = vcmask 130048
  %v119 = vsel %vm117, %v107, 0
  %121 = vmatprep.subr.mxu0 0.0
  %122 = vmatpush1.msra.mxu0 %v108
  %123 = vmatprep.subr.mxu0 0.0
  %124 = vmatpush1.msra.mxu0 %v109
  %125 = vmatprep.subr.mxu0 0.0
  %126 = vmatpush1.msra.mxu0 0.0
  %127 = vmatprep.subr.mxu0 0.0
  %128 = vmatpush1.msra.mxu0 0.0
  %129 = vmatprep.subr.mxu0 0.0
  %130 = vmatpush1.msra.mxu0 0.0
  %131 = vmatprep.subr.mxu0 0.0
  %132 = vmatpush1.msra.mxu0 0.0
  %133 = vmatprep.subr.mxu0 0.0
  %134 = vmatpush1.msra.mxu0 0.0
  %135 = vmatprep.subr.mxu0 0.0
  %136 = vmatpush1.msra.mxu0 0.0
  %137 = vmatprep.subr.mxu0 0.0
  %138 = vmatpush1.msra.mxu0 0.0
  %139 = vmatprep.subr.mxu0 0.0
  %140 = vmatpush1.msra.mxu0 0.0
  %141 = vmatprep.subr.mxu0 0.0
  %142 = vmatpush1.msra.mxu0 0.0
  %143 = vmatprep.subr.mxu0 0.0
  %144 = vmatpush1.msra.mxu0 0.0
  %145 = vmatprep.subr.mxu0 0.0
  %146 = vmatpush1.msra.mxu0 0.0
  %147 = vmatprep.subr.mxu0 0.0
  %148 = vmatpush1.msra.mxu0 0.0
  %149 = vmatprep.subr.mxu0 0.0
  %150 = vmatpush1.msra.mxu0 0.0
  %151 = vmatprep.subr.mxu0 0.0
  %152 = vmatpush1.msra.mxu0 0.0
  %153 = vmatprep.subr.mxu0 0.0
  %154 = vmatpush1.msra.mxu0 0.0
  %155 = vmatprep.subr.mxu0 0.0
  %156 = vmatpush1.msra.mxu0 0.0
  %157 = vmatprep.subr.mxu0 0.0
  %158 = vmatpush1.msra.mxu0 0.0
  %159 = vmatprep.subr.mxu0 0.0
  %160 = vmatpush1.msra.mxu0 0.0
  %161 = vmatprep.subr.mxu0 0.0
  %162 = vmatpush1.msra.mxu0 0.0
  %163 = vmatprep.subr.mxu0 0.0
  %164 = vmatpush1.msra.mxu0 0.0
  %165 = vmatprep.subr.mxu0 0.0
  %166 = vmatpush1.msra.mxu0 0.0
  %167 = vmatprep.subr.mxu0 0.0
  %168 = vmatpush1.msra.mxu0 0.0
  %169 = vmatprep.subr.mxu0 0.0
  %170 = vmatpush1.msra.mxu0 0.0
  %171 = vmatprep.subr.mxu0 0.0
  %172 = vmatpush1.msra.mxu0 0.0
  %173 = vmatprep.subr.mxu0 0.0
  %174 = vmatpush1.msra.mxu0 0.0
  %175 = vmatprep.subr.mxu0 0.0
  %176 = vmatpush1.msra.mxu0 0.0
  %177 = vmatprep.subr.mxu0 0.0
  %178 = vmatpush1.msra.mxu0 0.0
  %179 = vmatprep.subr.mxu0 0.0
  %180 = vmatpush1.msra.mxu0 0.0
  %181 = vmatprep.subr.mxu0 0.0
  %182 = vmatpush1.msra.mxu0 0.0
  %183 = vmatprep.subr.mxu0 0.0
  %184 = vmatpush1.msra.mxu0 0.0
  %185 = vmatprep.mubr.f32.mxu0 0.0
  %186 = vmatmul.mubr.f32.gmra.mrb[0].mxu0 %v119
  %v187 = vpop.f32.mrb[0].mxu0
  %v188 = vadd.f32 %v115, %v187
  %v189 = vpop.f32.mrb[0].mxu0
  %190 = vdwg.mxu0
  %vm191 = vcmask 15360
  %192 = vst.msk [vmem:[%s5] sm:$0xff] %vm191, %v188
  // Predicated region
  $region22: #{net_forward.1} parent=0 // pred_check
    _
  $region23: #{net_forward.1} parent=0 // pred_check_branch
    %194 = sbr.rel (0) target = $region25
  $region24: #{net_forward.1} parent=0 // pred_region
    _
  $region25: #{net_forward.1} parent=0 // pred_fallthru
    _
  // Predicated region
  $region26: #{net_forward.1} parent=0 // pred_check
    _
  $region27: #{net_forward.1} parent=0 // pred_check_branch
    %196 = sbr.rel (0) target = $region29
  $region28: #{net_forward.1} parent=0 // pred_region
    _
  $region29: #{net_forward.1} parent=0 // pred_fallthru
    _

</llo_original>
